<compile_context>
chip_gen: v5e
topology: v5e:2x2
jax: 0.10.0
libtpu: 0.0.40
codegen_flags: <defaults>
</compile_context>

<pallas_src>
import math
import functools

import jax
import jax.numpy as jnp
from jax.experimental import pallas as pl
from jax.experimental.pallas import tpu as pltpu


def _round_up(x, m):
    return ((x + m - 1) // m) * m


# ---------------------------------------------------------------------------
# Kernel
# ---------------------------------------------------------------------------
def _sublayer_connection_kernel(x_ref, a2_ref, b2_ref, w_ref, bias_ref, o_ref,
                                normed_ref, *, d_model, eps, col_block, n_cols):
    """Grid = (row_blocks, col_blocks); one step computes
         out[i, j] = x[i, j] + (LayerNorm(x[i, :]) @ W[:, j] + bias[j])

    x_ref      : (rows, D)          f32/bf16 input rows (block reused over j)
    a2_ref     : (1, D)       f32   LayerNorm scale
    b2_ref     : (1, D)       f32   LayerNorm shift
    w_ref      : (D, col_block) bf16  Linear weight column block, (in, out) layout
    bias_ref   : (1, col_block) f32   Linear bias column block
    o_ref      : (rows, col_block)    output block (x dtype)
    normed_ref : (rows, D)     bf16  VMEM scratch: LayerNorm(x) for this row
                                     block, computed once at j == 0.
    """
    j = pl.program_id(1)

    # ---- LayerNorm of the whole row block, once per row block (j == 0) ----
    @pl.when(j == 0)
    def _():
        x = x_ref[...].astype(jnp.float32)
        mean = jnp.sum(x, axis=-1, keepdims=True) * (1.0 / d_model)
        centered = x - mean
        # torch.Tensor.std default is unbiased (ddof=1); eps is added to std.
        var = jnp.sum(centered * centered, axis=-1, keepdims=True) * (
            1.0 / max(d_model - 1, 1))
        inv_std = 1.0 / (jnp.sqrt(var) + eps)     # exact; no EUP contention here
        normed = a2_ref[...] * centered * inv_std + b2_ref[...]
        normed_ref[...] = normed.astype(normed_ref.dtype)

    # ---- sublayer = Linear: bf16 operands on the MXU, f32 accumulation ----
    y = jnp.dot(normed_ref[...], w_ref[...],
                preferred_element_type=jnp.float32) + bias_ref[...]

    # ---- residual connection (dropout = identity in eval mode) ----
    if n_cols == 1:
        x_cols = x_ref[...]
    else:
        start = pl.multiple_of(j * col_block, 128)
        x_cols = x_ref[:, pl.ds(start, col_block)]
    o_ref[...] = (x_cols.astype(jnp.float32) + y).astype(o_ref.dtype)


# ---------------------------------------------------------------------------
# Tiling heuristics
# ---------------------------------------------------------------------------
def _choose_tiles(R, D, x_bytes, out_bytes, col_block_hint=None):
    # Output-column tile (width of the W block).
    if D % 128 != 0:
        col_block = D                     # tiny / odd d_model: one full-width block
    elif col_block_hint is not None:
        assert col_block_hint % 128 == 0 and D % col_block_hint == 0
        col_block = col_block_hint
    elif 2 * (D * D * 2) <= 8 * 1024 * 1024:   # double-buffered bf16 W <= 8 MiB
        col_block = D
    elif D % 512 == 0:
        col_block = 512
    elif D % 256 == 0:
        col_block = 256
    else:
        col_block = 128
    n_cols = D // col_block

    # Row tile from a conservative VMEM budget (safe on v5e / v6e / v7x 64MiB).
    w_vmem = 2 * D * col_block * 2                                   # bf16 W blocks
    per_row = 2 * D * x_bytes + 2 * col_block * out_bytes + 2 * D    # x+out (dbl) + scratch
    avail = 40 * 1024 * 1024 - w_vmem - (1 << 20)
    row_block = max(8, min(1024, avail // per_row))
    # v7x megacore: keep >= 2 row blocks when R allows so the "parallel" axis
    # can split across both TensorCores (inert on single-TC v5e / v6e).
    row_block = min(row_block, _round_up(pl.cdiv(R, 2), 8))
    row_block = max(8, (row_block // 8) * 8)
    return row_block, col_block, n_cols


# ---------------------------------------------------------------------------
# Wrapper
# ---------------------------------------------------------------------------
def sublayer_connection_linear(x, a_2, b_2, w, bias, *, eps=1e-6, col_block=None):
    """Fused SublayerConnection forward with a Linear(d_model, d_model) sublayer.

        out = x + Linear(LayerNorm(x))            (dropout = identity, eval mode)

    x    : (B, N, D) float32 or bfloat16 (bf16 halves HBM traffic)
    a_2  : (D,) LayerNorm scale          b_2 : (D,) LayerNorm shift
    w    : (D, D) Linear weight in (in, out) layout, i.e. y = x @ w + bias.
           NOTE: PyTorch nn.Linear stores (out, in); pass `linear.weight.T`.
    bias : (D,) or (1, D) Linear bias
    """
    B, N, D = x.shape
    R = B * N
    assert a_2.shape == (D,) and b_2.shape == (D,)
    assert w.shape == (D, D), "w must be (d_model, d_model) in (in, out) layout"

    # No activation copies: just a reshape (view) of x; parameters are tiny.
    x2 = x.reshape(R, D)
    a2 = a_2.reshape(1, D).astype(jnp.float32)
    b2 = b_2.reshape(1, D).astype(jnp.float32)
    w_bf16 = w.astype(jnp.bfloat16)               # MXU operand dtype (f32 accumulate)
    bias2 = jnp.asarray(bias).reshape(1, D).astype(jnp.float32)

    itemsize = jnp.dtype(x.dtype).itemsize
    row_block, col_block, n_cols = _choose_tiles(R, D, itemsize, itemsize, col_block)
    n_rows = pl.cdiv(R, row_block)     # partial last block handled by Pallas masking

    # Explicit scoped-VMEM limit (v5e default is only 16 MiB), sized from what
    # this launch actually needs, capped below v7x's 64 MiB physical VMEM.
    est_vmem = (2 * row_block * D * itemsize            # x blocks (double buffered)
                + 2 * row_block * col_block * itemsize  # out blocks
                + 2 * D * col_block * 2                 # W blocks (bf16)
                + row_block * D * 2                     # normed scratch (bf16)
                + 8 * max(D, 128) * 4)                  # a_2 / b_2 / bias
    vmem_limit = int(min(56 * 2**20, max(est_vmem + (8 << 20), 16 << 20)))

    kernel = functools.partial(_sublayer_connection_kernel, d_model=D, eps=eps,
                               col_block=col_block, n_cols=n_cols)

    def call(single_buffer_resident):
        def resident(shape):
            # Blocks whose index never changes; one VMEM buffer is enough.
            if single_buffer_resident:
                return pl.BlockSpec(shape, lambda i, j: (0, 0),
                                    pipeline_mode=pl.Buffered(1))
            return pl.BlockSpec(shape, lambda i, j: (0, 0))

        if n_cols == 1:
            w_spec = resident((D, col_block))
            bias_spec = resident((1, col_block))
        else:
            w_spec = pl.BlockSpec((D, col_block), lambda i, j: (0, j))
            bias_spec = pl.BlockSpec((1, col_block), lambda i, j: (0, j))

        return pl.pallas_call(
            kernel,
            out_shape=jax.ShapeDtypeStruct((R, D), x.dtype),
            grid=(n_rows, n_cols),
            in_specs=[
                pl.BlockSpec((row_block, D), lambda i, j: (i, 0)),  # x (reused over j)
                resident((1, D)),                                   # a_2
                resident((1, D)),                                   # b_2
                w_spec,                                             # W column block
                bias_spec,                                          # bias column block
            ],
            out_specs=pl.BlockSpec((row_block, col_block), lambda i, j: (i, j)),
            scratch_shapes=[pltpu.VMEM((row_block, D), jnp.bfloat16)],
            compiler_params=pltpu.CompilerParams(
                dimension_semantics=("parallel", "arbitrary"),
                vmem_limit_bytes=vmem_limit),
        )(x2, a2, b2, w_bf16, bias2)

    try:
        out2 = call(single_buffer_resident=True)
    except Exception:
        # pl.Buffered(1) / pipeline_mode not supported by this jax build:
        # fall back to default double buffering (correct, slightly more VMEM).
        out2 = call(single_buffer_resident=False)

    return out2.reshape(B, N, D)


# ---------------------------------------------------------------------------
# Reference & demo
# ---------------------------------------------------------------------------
def _reference(x, a_2, b_2, w, bias, *, eps=1e-6):
    """Pure-JAX replica of the PyTorch forward (eval mode, Linear sublayer)."""
    x = x.astype(jnp.float32)
    mean = jnp.mean(x, axis=-1, keepdims=True)
    std = jnp.std(x, axis=-1, keepdims=True, ddof=1)   # torch.std default: unbiased
    normed = a_2 * (x - mean) / (std + eps) + b_2
    return x + (normed @ w + jnp.asarray(bias).reshape(1, -1))


if __name__ == "__main__":
    def make_inputs(key, B, N, D, dtype=jnp.float32):
        kx, ka, kb, kw, kbias = jax.random.split(key, 5)
        x = jax.random.normal(kx, (B, N, D), jnp.float32).astype(dtype)
        a_2 = 1.0 + 0.1 * jax.random.normal(ka, (D,), jnp.float32)
        b_2 = 0.1 * jax.random.normal(kb, (D,), jnp.float32)
        bound = 1.0 / math.sqrt(D)
        w = jax.random.uniform(kw, (D, D), jnp.float32, -bound, bound)   # (in, out)
        bias = jax.random.uniform(kbias, (D,), jnp.float32, -bound, bound)
        return x, a_2, b_2, w, bias

    k1, k2, k3 = jax.random.split(jax.random.PRNGKey(0), 3)

    # 1) module-sized problem: batch=2, seq=8, d_model(size)=32
    #    (non-128-multiple D -> single full-width block, no padding anywhere).
    x, a_2, b_2, w, bias = make_inputs(k1, 2, 8, 32)
    out = jax.block_until_ready(sublayer_connection_linear(x, a_2, b_2, w, bias))
    ref = _reference(x, a_2, b_2, w, bias)
    assert out.shape == x.shape and bool(jnp.all(jnp.isfinite(out)))
    err = float(jnp.max(jnp.abs(out - ref)))
    assert jnp.allclose(out, ref, atol=2e-2, rtol=2e-2), f"mismatch: {err}"

    # 2) lane-aligned d_model with forced W column tiling (exercises the 2-D
    #    grid / cached-LayerNorm / column-tiled-W path used for large d_model).
    x, a_2, b_2, w, bias = make_inputs(k2, 2, 64, 256)
    out = jax.block_until_ready(
        sublayer_connection_linear(x, a_2, b_2, w, bias, col_block=128))
    ref = _reference(x, a_2, b_2, w, bias)
    err = float(jnp.max(jnp.abs(out - ref)))
    assert jnp.allclose(out, ref, atol=2e-2, rtol=2e-2), f"mismatch (tiled W): {err}"

    # 3) bf16 activation I/O path (halves HBM traffic on this mem-bound op).
    x, a_2, b_2, w, bias = make_inputs(k3, 2, 64, 128, dtype=jnp.bfloat16)
    out = jax.block_until_ready(sublayer_connection_linear(x, a_2, b_2, w, bias))
    ref = _reference(x, a_2, b_2, w, bias)
    assert out.dtype == jnp.bfloat16
    err = float(jnp.max(jnp.abs(out.astype(jnp.float32) - ref)))
    assert jnp.allclose(out.astype(jnp.float32), ref, atol=2.5e-1, rtol=1e-1), \
        f"mismatch (bf16): {err}"

    print("KERNEL_OK")
</pallas_src>

<mosaic_0001>
module attributes {stable_mosaic.version = 11 : i64} {
  func.func @_sublayer_connection_kernel(%arg0: i32, %arg1: i32, %arg2: memref<8x32xf32, #tpu.memory_space<vmem>>, %arg3: memref<1x32xf32, #tpu.memory_space<vmem>>, %arg4: memref<1x32xf32, #tpu.memory_space<vmem>>, %arg5: memref<32x32xbf16, #tpu.memory_space<vmem>>, %arg6: memref<1x32xf32, #tpu.memory_space<vmem>>, %arg7: memref<8x32xf32, #tpu.memory_space<vmem>>, %arg8: memref<8x32xbf16, #tpu.memory_space<vmem>>) attributes {dimension_semantics = [#tpu.dimension_semantics<parallel>, #tpu.dimension_semantics<arbitrary>], iteration_bounds = array<i64: 2, 1>, scalar_prefetch = 0 : i64, scratch_operands = 1 : i64, tpu.core_type = #tpu.core_type<tc>, window_params = [{transform_indices = @transform_0, window_bounds = array<i64: 8, 32>}, {pipeline_mode = #tpu.pipeline_mode<synchronous>, transform_indices = @transform_1, window_bounds = array<i64: 1, 32>}, {pipeline_mode = #tpu.pipeline_mode<synchronous>, transform_indices = @transform_2, window_bounds = array<i64: 1, 32>}, {pipeline_mode = #tpu.pipeline_mode<synchronous>, transform_indices = @transform_3, window_bounds = array<i64: 32, 32>}, {pipeline_mode = #tpu.pipeline_mode<synchronous>, transform_indices = @transform_4, window_bounds = array<i64: 1, 32>}, {transform_indices = @transform_5, window_bounds = array<i64: 8, 32>}]} {
    %c0_i32 = arith.constant 0 : i32
    %0 = arith.cmpi eq, %arg1, %c0_i32 : i32
    %1 = arith.extui %0 : i1 to i32
    %c0_i32_0 = arith.constant 0 : i32
    %2 = arith.cmpi ne, %1, %c0_i32_0 : i32
    scf.if %2 {
      %c0_10 = arith.constant 0 : index
      %c0_11 = arith.constant 0 : index
      %12 = vector.load %arg2[%c0_10, %c0_11] : memref<8x32xf32, #tpu.memory_space<vmem>>, vector<8x32xf32>
      %cst_12 = arith.constant dense<0.000000e+00> : vector<8xf32>
      %13 = vector.multi_reduction <add>, %12, %cst_12 [1] : vector<8x32xf32> to vector<8xf32>
      %14 = vector.shape_cast %13 : vector<8xf32> to vector<8x1xf32>
      %cst_13 = arith.constant 3.125000e-02 : f32
      %15 = vector.broadcast %cst_13 : f32 to vector<8x1xf32>
      %16 = arith.mulf %14, %15 : vector<8x1xf32>
      %17 = vector.broadcast %16 : vector<8x1xf32> to vector<8x32xf32>
      %18 = arith.subf %12, %17 : vector<8x32xf32>
      %19 = arith.mulf %18, %18 : vector<8x32xf32>
      %cst_14 = arith.constant dense<0.000000e+00> : vector<8xf32>
      %20 = vector.multi_reduction <add>, %19, %cst_14 [1] : vector<8x32xf32> to vector<8xf32>
      %21 = vector.shape_cast %20 : vector<8xf32> to vector<8x1xf32>
      %cst_15 = arith.constant 0.0322580636 : f32
      %22 = vector.broadcast %cst_15 : f32 to vector<8x1xf32>
      %23 = arith.mulf %21, %22 : vector<8x1xf32>
      %24 = math.sqrt %23 : vector<8x1xf32>
      %cst_16 = arith.constant 9.99999997E-7 : f32
      %25 = vector.broadcast %cst_16 : f32 to vector<8x1xf32>
      %26 = arith.addf %24, %25 : vector<8x1xf32>
      %cst_17 = arith.constant 1.000000e+00 : f32
      %27 = vector.broadcast %cst_17 : f32 to vector<8x1xf32>
      %28 = arith.divf %27, %26 : vector<8x1xf32>
      %c0_18 = arith.constant 0 : index
      %c0_19 = arith.constant 0 : index
      %29 = vector.load %arg3[%c0_18, %c0_19] : memref<1x32xf32, #tpu.memory_space<vmem>>, vector<1x32xf32>
      %30 = vector.broadcast %29 : vector<1x32xf32> to vector<8x32xf32>
      %31 = arith.mulf %30, %18 : vector<8x32xf32>
      %32 = vector.broadcast %28 : vector<8x1xf32> to vector<8x32xf32>
      %33 = arith.mulf %31, %32 : vector<8x32xf32>
      %c0_20 = arith.constant 0 : index
      %c0_21 = arith.constant 0 : index
      %34 = vector.load %arg4[%c0_20, %c0_21] : memref<1x32xf32, #tpu.memory_space<vmem>>, vector<1x32xf32>
      %35 = vector.broadcast %34 : vector<1x32xf32> to vector<8x32xf32>
      %36 = arith.addf %33, %35 : vector<8x32xf32>
      %37 = arith.truncf %36 : vector<8x32xf32> to vector<8x32xbf16>
      %c0_22 = arith.constant 0 : index
      %c0_23 = arith.constant 0 : index
      %38 = vector.load %arg8[%c0_22, %c0_23] : memref<8x32xbf16, #tpu.memory_space<vmem>>, vector<8x32xbf16>
      tpu.vector_store %arg8[%c0_22, %c0_23], %37 {strides = array<i32>} : memref<8x32xbf16, #tpu.memory_space<vmem>>, vector<8x32xbf16>,
    } else {
    }
    %c0 = arith.constant 0 : index
    %c0_1 = arith.constant 0 : index
    %3 = vector.load %arg8[%c0, %c0_1] : memref<8x32xbf16, #tpu.memory_space<vmem>>, vector<8x32xbf16>
    %c0_2 = arith.constant 0 : index
    %c0_3 = arith.constant 0 : index
    %4 = vector.load %arg5[%c0_2, %c0_3] : memref<32x32xbf16, #tpu.memory_space<vmem>>, vector<32x32xbf16>
    %cst = arith.constant dense<0.000000e+00> : vector<8x32xf32>
    %5 = tpu.matmul %3, %4, %cst {dimension_numbers = #tpu.dot_dimension_numbers<[1], [0], [0], [1], [0, 0, 1, 1], [], []>} : vector<8x32xbf16>, vector<32x32xbf16>, vector<8x32xf32> -> vector<8x32xf32>
    %c0_4 = arith.constant 0 : index
    %c0_5 = arith.constant 0 : index
    %6 = vector.load %arg6[%c0_4, %c0_5] : memref<1x32xf32, #tpu.memory_space<vmem>>, vector<1x32xf32>
    %7 = vector.broadcast %6 : vector<1x32xf32> to vector<8x32xf32>
    %8 = arith.addf %5, %7 : vector<8x32xf32>
    %c0_6 = arith.constant 0 : index
    %c0_7 = arith.constant 0 : index
    %9 = vector.load %arg2[%c0_6, %c0_7] : memref<8x32xf32, #tpu.memory_space<vmem>>, vector<8x32xf32>
    %10 = arith.addf %9, %8 : vector<8x32xf32>
    %c0_8 = arith.constant 0 : index
    %c0_9 = arith.constant 0 : index
    %11 = vector.load %arg7[%c0_8, %c0_9] : memref<8x32xf32, #tpu.memory_space<vmem>>, vector<8x32xf32>
    tpu.vector_store %arg7[%c0_8, %c0_9], %10 {strides = array<i32>} : memref<8x32xf32, #tpu.memory_space<vmem>>, vector<8x32xf32>,
    return
  }
  func.func @transform_0(%arg0: i32, %arg1: i32) -> (i32, i32) {
    %c0_i32 = arith.constant 0 : i32
    %c0_i32_0 = arith.constant 0 : i32
    return %arg0, %c0_i32 : i32, i32
  }
  func.func @transform_1(%arg0: i32, %arg1: i32) -> (i32, i32) {
    %c0_i32 = arith.constant 0 : i32
    %c0_i32_0 = arith.constant 0 : i32
    %c0_i32_1 = arith.constant 0 : i32
    return %c0_i32, %c0_i32_0 : i32, i32
  }
  func.func @transform_2(%arg0: i32, %arg1: i32) -> (i32, i32) {
    %c0_i32 = arith.constant 0 : i32
    %c0_i32_0 = arith.constant 0 : i32
    %c0_i32_1 = arith.constant 0 : i32
    return %c0_i32, %c0_i32_0 : i32, i32
  }
  func.func @transform_3(%arg0: i32, %arg1: i32) -> (i32, i32) {
    %c0_i32 = arith.constant 0 : i32
    %c0_i32_0 = arith.constant 0 : i32
    %c0_i32_1 = arith.constant 0 : i32
    return %c0_i32, %c0_i32_0 : i32, i32
  }
  func.func @transform_4(%arg0: i32, %arg1: i32) -> (i32, i32) {
    %c0_i32 = arith.constant 0 : i32
    %c0_i32_0 = arith.constant 0 : i32
    %c0_i32_1 = arith.constant 0 : i32
    return %c0_i32, %c0_i32_0 : i32, i32
  }
  func.func @transform_5(%arg0: i32, %arg1: i32) -> (i32, i32) {
    %c0_i32 = arith.constant 0 : i32
    return %arg0, %arg1 : i32, i32
  }
}

module attributes {stable_mosaic.version = 11 : i64} {
  func.func @_sublayer_connection_kernel(%arg0: i32, %arg1: i32, %arg2: memref<8x32xf32, #tpu.memory_space<vmem>>, %arg3: memref<1x32xf32, #tpu.memory_space<vmem>>, %arg4: memref<1x32xf32, #tpu.memory_space<vmem>>, %arg5: memref<32x32xbf16, #tpu.memory_space<vmem>>, %arg6: memref<1x32xf32, #tpu.memory_space<vmem>>, %arg7: memref<8x32xf32, #tpu.memory_space<vmem>>, %arg8: memref<8x32xbf16, #tpu.memory_space<vmem>>) attributes {dimension_semantics = [#tpu.dimension_semantics<parallel>, #tpu.dimension_semantics<arbitrary>], iteration_bounds = array<i64: 2, 1>, scalar_prefetch = 0 : i64, scratch_operands = 1 : i64, tpu.core_type = #tpu.core_type<tc>, window_params = [{transform_indices = @transform_0, window_bounds = array<i64: 8, 32>}, {pipeline_mode = #tpu.pipeline_mode<synchronous>, transform_indices = @transform_1, window_bounds = array<i64: 1, 32>}, {pipeline_mode = #tpu.pipeline_mode<synchronous>, transform_indices = @transform_2, window_bounds = array<i64: 1, 32>}, {pipeline_mode = #tpu.pipeline_mode<synchronous>, transform_indices = @transform_3, window_bounds = array<i64: 32, 32>}, {pipeline_mode = #tpu.pipeline_mode<synchronous>, transform_indices = @transform_4, window_bounds = array<i64: 1, 32>}, {transform_indices = @transform_5, window_bounds = array<i64: 8, 32>}]} {
    %c0_i32 = arith.constant 0 : i32
    %0 = arith.cmpi eq, %arg1, %c0_i32 : i32
    %1 = arith.extui %0 : i1 to i32
    %c0_i32_0 = arith.constant 0 : i32
    %2 = arith.cmpi ne, %1, %c0_i32_0 : i32
    scf.if %2 {
      %c0_10 = arith.constant 0 : index
      %c0_11 = arith.constant 0 : index
      %12 = vector.load %arg2[%c0_10, %c0_11] : memref<8x32xf32, #tpu.memory_space<vmem>>, vector<8x32xf32>
      %cst_12 = arith.constant dense<0.000000e+00> : vector<8xf32>
      %13 = vector.multi_reduction <add>, %12, %cst_12 [1] : vector<8x32xf32> to vector<8xf32>
      %14 = vector.shape_cast %13 : vector<8xf32> to vector<8x1xf32>
      %cst_13 = arith.constant 3.125000e-02 : f32
      %15 = vector.broadcast %cst_13 : f32 to vector<8x1xf32>
      %16 = arith.mulf %14, %15 : vector<8x1xf32>
      %17 = vector.broadcast %16 : vector<8x1xf32> to vector<8x32xf32>
      %18 = arith.subf %12, %17 : vector<8x32xf32>
      %19 = arith.mulf %18, %18 : vector<8x32xf32>
      %cst_14 = arith.constant dense<0.000000e+00> : vector<8xf32>
      %20 = vector.multi_reduction <add>, %19, %cst_14 [1] : vector<8x32xf32> to vector<8xf32>
      %21 = vector.shape_cast %20 : vector<8xf32> to vector<8x1xf32>
      %cst_15 = arith.constant 0.0322580636 : f32
      %22 = vector.broadcast %cst_15 : f32 to vector<8x1xf32>
      %23 = arith.mulf %21, %22 : vector<8x1xf32>
      %24 = math.sqrt %23 : vector<8x1xf32>
      %cst_16 = arith.constant 9.99999997E-7 : f32
      %25 = vector.broadcast %cst_16 : f32 to vector<8x1xf32>
      %26 = arith.addf %24, %25 : vector<8x1xf32>
      %cst_17 = arith.constant 1.000000e+00 : f32
      %27 = vector.broadcast %cst_17 : f32 to vector<8x1xf32>
      %28 = arith.divf %27, %26 : vector<8x1xf32>
      %c0_18 = arith.constant 0 : index
      %c0_19 = arith.constant 0 : index
      %29 = vector.load %arg3[%c0_18, %c0_19] : memref<1x32xf32, #tpu.memory_space<vmem>>, vector<1x32xf32>
      %30 = vector.broadcast %29 : vector<1x32xf32> to vector<8x32xf32>
      %31 = arith.mulf %30, %18 : vector<8x32xf32>
      %32 = vector.broadcast %28 : vector<8x1xf32> to vector<8x32xf32>
      %33 = arith.mulf %31, %32 : vector<8x32xf32>
      %c0_20 = arith.constant 0 : index
      %c0_21 = arith.constant 0 : index
      %34 = vector.load %arg4[%c0_20, %c0_21] : memref<1x32xf32, #tpu.memory_space<vmem>>, vector<1x32xf32>
      %35 = vector.broadcast %34 : vector<1x32xf32> to vector<8x32xf32>
      %36 = arith.addf %33, %35 : vector<8x32xf32>
      %37 = arith.truncf %36 : vector<8x32xf32> to vector<8x32xbf16>
      %c0_22 = arith.constant 0 : index
      %c0_23 = arith.constant 0 : index
      %38 = vector.load %arg8[%c0_22, %c0_23] : memref<8x32xbf16, #tpu.memory_space<vmem>>, vector<8x32xbf16>
      tpu.vector_store %arg8[%c0_22, %c0_23], %37 {strides = array<i32>} : memref<8x32xbf16, #tpu.memory_space<vmem>>, vector<8x32xbf16>,
    } else {
    }
    %c0 = arith.constant 0 : index
    %c0_1 = arith.constant 0 : index
    %3 = vector.load %arg8[%c0, %c0_1] : memref<8x32xbf16, #tpu.memory_space<vmem>>, vector<8x32xbf16>
    %c0_2 = arith.constant 0 : index
    %c0_3 = arith.constant 0 : index
    %4 = vector.load %arg5[%c0_2, %c0_3] : memref<32x32xbf16, #tpu.memory_space<vmem>>, vector<32x32xbf16>
    %cst = arith.constant dense<0.000000e+00> : vector<8x32xf32>
    %5 = tpu.matmul %3, %4, %cst {dimension_numbers = #tpu.dot_dimension_numbers<[1], [0], [0], [1], [0, 0, 1, 1], [], []>} : vector<8x32xbf16>, vector<32x32xbf16>, vector<8x32xf32> -> vector<8x32xf32>
    %c0_4 = arith.constant 0 : index
    %c0_5 = arith.constant 0 : index
    %6 = vector.load %arg6[%c0_4, %c0_5] : memref<1x32xf32, #tpu.memory_space<vmem>>, vector<1x32xf32>
    %7 = vector.broadcast %6 : vector<1x32xf32> to vector<8x32xf32>
    %8 = arith.addf %5, %7 : vector<8x32xf32>
    %c0_6 = arith.constant 0 : index
    %c0_7 = arith.constant 0 : index
    %9 = vector.load %arg2[%c0_6, %c0_7] : memref<8x32xf32, #tpu.memory_space<vmem>>, vector<8x32xf32>
    %10 = arith.addf %9, %8 : vector<8x32xf32>
    %c0_8 = arith.constant 0 : index
    %c0_9 = arith.constant 0 : index
    %11 = vector.load %arg7[%c0_8, %c0_9] : memref<8x32xf32, #tpu.memory_space<vmem>>, vector<8x32xf32>
    tpu.vector_store %arg7[%c0_8, %c0_9], %10 {strides = array<i32>} : memref<8x32xf32, #tpu.memory_space<vmem>>, vector<8x32xf32>,
    return
  }
  func.func @transform_0(%arg0: i32, %arg1: i32) -> (i32, i32) {
    %c0_i32 = arith.constant 0 : i32
    %c0_i32_0 = arith.constant 0 : i32
    return %arg0, %c0_i32 : i32, i32
  }
  func.func @transform_1(%arg0: i32, %arg1: i32) -> (i32, i32) {
    %c0_i32 = arith.constant 0 : i32
    %c0_i32_0 = arith.constant 0 : i32
    %c0_i32_1 = arith.constant 0 : i32
    return %c0_i32, %c0_i32_0 : i32, i32
  }
  func.func @transform_2(%arg0: i32, %arg1: i32) -> (i32, i32) {
    %c0_i32 = arith.constant 0 : i32
    %c0_i32_0 = arith.constant 0 : i32
    %c0_i32_1 = arith.constant 0 : i32
    return %c0_i32, %c0_i32_0 : i32, i32
  }
  func.func @transform_3(%arg0: i32, %arg1: i32) -> (i32, i32) {
    %c0_i32 = arith.constant 0 : i32
    %c0_i32_0 = arith.constant 0 : i32
    %c0_i32_1 = arith.constant 0 : i32
    return %c0_i32, %c0_i32_0 : i32, i32
  }
  func.func @transform_4(%arg0: i32, %arg1: i32) -> (i32, i32) {
    %c0_i32 = arith.constant 0 : i32
    %c0_i32_0 = arith.constant 0 : i32
    %c0_i32_1 = arith.constant 0 : i32
    return %c0_i32, %c0_i32_0 : i32, i32
  }
  func.func @transform_5(%arg0: i32, %arg1: i32) -> (i32, i32) {
    %c0_i32 = arith.constant 0 : i32
    return %arg0, %arg1 : i32, i32
  }
}

</mosaic_0001>

<llo_original>
// kernel: tpu_custom_call.1
$region0: #{tpu_custom_call.1}
  #allocation0 [shape = 'u32[]', space=smem, size = 0x4, offset = 0x4, fixed_abs, tag = 'smem constant byte address 0x4 - core index']
  #allocation1 [shape = 'u32[72,128]{1,0:T(1,128)}', space=vmem, size = 0x9000, scoped, tag = 'internal scratch']
  #allocation2 [shape = 'bf16[8,32]{1,0:T(8,128)(2,1)}', space=vmem, size = 0x800, scoped, tag = 'scratch operand']
  %s0 = inlined_call_operand.hbm [shape: f32[16,32], index: 0, kind: input, shape index: {}]
  %s1 = inlined_call_operand.hbm [shape: f32[1,32], index: 1, kind: input, shape index: {}]
  %s2 = inlined_call_operand.vmem [shape: f32[1,32], index: 2, kind: input, shape index: {}]
  %s3 = inlined_call_operand.hbm [shape: bf16[32,32], index: 3, kind: input, shape index: {}]
  %s4 = inlined_call_operand.vmem [shape: f32[1,32], index: 4, kind: input, shape index: {}]
  %s5 = inlined_call_operand.hbm [shape: f32[16,32], index: 5, kind: output, shape index: {}]
  %s6 = sld [smem:[#allocation0]]
  $region69: #{tpu_custom_call.1} parent=0
    _
  %s8 = ssub.s32 1, %s6
  %s9 = scalar_select 0, %s8, %s6
  $region1: #{tpu_custom_call.1} parent=0
    #allocation3 [shape = 'u8[8192]{0}', space=vmem, size = 0x2000, scoped, tag = 'input window, operand 0']
    #allocation4 [shape = 's32[2]{0}', space=sflag, size = 0x8, scoped, tag = 'scoped memory for tpu_custom_call.1']
    #allocation5 [shape = 's32[2]{0}', space=sflag, size = 0x8, scoped, tag = 'scoped memory for tpu_custom_call.1']
    #allocation6 [shape = 'u8[512]{0}', space=vmem, size = 0x400, scoped, tag = 'input window, operand 1, single buffered']
    #allocation7 [shape = 's32[1]{0}', space=sflag, size = 0x4, scoped, tag = 'scoped memory for tpu_custom_call.1']
    #allocation8 [shape = 'u8[8192]{0}', space=vmem, size = 0x2000, scoped, tag = 'input window, operand 3, single buffered']
    #allocation9 [shape = 'u8[8192]{0}', space=vmem, size = 0x2000, scoped, tag = 'output window, operand 0']
    %10 = vsyncpa [#allocation4], 0
    %s11 = scalar_lea.sflag [#allocation4], 1
    %12 = vsyncpa %s11, 0
    %13 = vsyncpa [#allocation7], 0
    %14 = vsyncpa [#allocation5], 0
    %s15 = scalar_lea.sflag [#allocation5], 1
    %16 = vsyncpa %s15, 0
    loop: start=0, step=1, limit=4
    $region2: #{tpu_custom_call.1} parent=1 // loop_pre_header
      _
    $region3: #{tpu_custom_call.1} parent=1 // loop_header
      %s18 = sphi 0, %s22
      %p19 = scmp.ge.s32.totalorder %s18, 4
      %s25 = sphi 0, %s37
      %s26 = sphi 0, %s33
      %s27 = sphi 0, %s25
      %s28 = sphi 0, %s26
      %s29 = sphi 0, %s27
      %s30 = sphi 0, %s28
      %s40 = sphi 0, %s42
      %s43 = sphi 0, %s40
      %s44 = sphi 0, %s43
      %s60 = sphi 0, %s44
      %s64 = sphi 0, %s64
      %s66 = sphi 0, %s64
      %s67 = sphi 0, %s66
      %s81 = sphi 0, %s67
      %s85 = sphi 0, %s85
      %s87 = sphi 0, %s85
      %s88 = sphi 0, %s87
      %s102 = sphi 0, %s88
      %s106 = sphi 0, %s106
      %s108 = sphi 0, %s106
      %s109 = sphi 0, %s108
      %s123 = sphi 0, %s109
      %s127 = sphi 0, %s127
      %s129 = sphi 0, %s127
      %s130 = sphi 0, %s129
      %s144 = sphi 0, %s130
      %s152 = sphi 0, %s154
      %s155 = sphi 0, %s152
      %s156 = sphi 0, %s155
      %s172 = sphi 0, %s156
    $region4: #{tpu_custom_call.1} parent=1 // loop_header_branch
      %21 = sbr.rel (%p19) target = $region8
    $region5: #{tpu_custom_call.1} parent=1 // loop_body
      %s23 = ssub.s32 %s18, 1
      %s24 = ssub.s32 %s18, 2
      %s31 = sadd.s32 1, %s26
      %p32 = scmp.ge.s32.totalorder %s31, 1
      %s33 = scalar_select %p32, 0, %s31
      %s34 = sadd.s32 1, %s25
      %s35 = scalar_select %p32, %s34, %s25
      %p36 = scmp.ge.s32.totalorder %s35, 2
      %s37 = scalar_select %p36, 0, %s35
      %s38 = ssub.s32 %s25, %s37
      %p39 = scmp.eq.s32.totalorder %s38, 0
      %s41 = sadd.s32 %s40, 1
      %s42 = scalar_select %p39, %s40, %s41
      %p45 = pneg %p39
      %p46 = scmp.eq.s32.totalorder %s18, 1
      %p47 = por %p45, %p46
      %p48 = scmp.ne.s32.totalorder %s40, %s43
      %p49 = scmp.eq.s32.totalorder %s18, 0
      %p50 = por %p48, %p49
      %p51 = scmp.ne.s32.totalorder %s40, %s43
      %p52 = scmp.eq.s32.totalorder %s23, 1
      %p53 = por %p51, %p52
      %p54 = scmp.ne.s32.totalorder %s43, %s44
      %p55 = scmp.eq.s32.totalorder %s23, 0
      %p56 = por %p54, %p55
      %p57 = scmp.ne.s32.totalorder %s43, %s44
      %p58 = scmp.eq.s32.totalorder %s24, 1
      %p59 = por %p57, %p58
      %p61 = scmp.ne.s32.totalorder %s44, %s60
      %p62 = scmp.eq.s32.totalorder %s24, 0
      %p63 = por %p61, %p62
      %s65 = sadd.s32 %s64, 1
      %p68 = scmp.eq.s32.totalorder %s18, 1
      %p69 = scmp.ne.s32.totalorder %s64, %s66
      %p70 = scmp.eq.s32.totalorder %s18, 0
      %p71 = por %p69, %p70
      %p72 = scmp.ne.s32.totalorder %s64, %s66
      %p73 = scmp.eq.s32.totalorder %s23, 1
      %p74 = por %p72, %p73
      %p75 = scmp.ne.s32.totalorder %s66, %s67
      %p76 = scmp.eq.s32.totalorder %s23, 0
      %p77 = por %p75, %p76
      %p78 = scmp.ne.s32.totalorder %s66, %s67
      %p79 = scmp.eq.s32.totalorder %s24, 1
      %p80 = por %p78, %p79
      %p82 = scmp.ne.s32.totalorder %s67, %s81
      %p83 = scmp.eq.s32.totalorder %s24, 0
      %p84 = por %p82, %p83
      %s86 = sadd.s32 %s85, 1
      %p89 = scmp.eq.s32.totalorder %s18, 1
      %p90 = scmp.ne.s32.totalorder %s85, %s87
      %p91 = scmp.eq.s32.totalorder %s18, 0
      %p92 = por %p90, %p91
      %p93 = scmp.ne.s32.totalorder %s85, %s87
      %p94 = scmp.eq.s32.totalorder %s23, 1
      %p95 = por %p93, %p94
      %p96 = scmp.ne.s32.totalorder %s87, %s88
      %p97 = scmp.eq.s32.totalorder %s23, 0
      %p98 = por %p96, %p97
      %p99 = scmp.ne.s32.totalorder %s87, %s88
      %p100 = scmp.eq.s32.totalorder %s24, 1
      %p101 = por %p99, %p100
      %p103 = scmp.ne.s32.totalorder %s88, %s102
      %p104 = scmp.eq.s32.totalorder %s24, 0
      %p105 = por %p103, %p104
      %s107 = sadd.s32 %s106, 1
      %p110 = scmp.eq.s32.totalorder %s18, 1
      %p111 = scmp.ne.s32.totalorder %s106, %s108
      %p112 = scmp.eq.s32.totalorder %s18, 0
      %p113 = por %p111, %p112
      %p114 = scmp.ne.s32.totalorder %s106, %s108
      %p115 = scmp.eq.s32.totalorder %s23, 1
      %p116 = por %p114, %p115
      %p117 = scmp.ne.s32.totalorder %s108, %s109
      %p118 = scmp.eq.s32.totalorder %s23, 0
      %p119 = por %p117, %p118
      %p120 = scmp.ne.s32.totalorder %s108, %s109
      %p121 = scmp.eq.s32.totalorder %s24, 1
      %p122 = por %p120, %p121
      %p124 = scmp.ne.s32.totalorder %s109, %s123
      %p125 = scmp.eq.s32.totalorder %s24, 0
      %p126 = por %p124, %p125
      %s128 = sadd.s32 %s127, 1
      %p131 = scmp.eq.s32.totalorder %s18, 1
      %p132 = scmp.ne.s32.totalorder %s127, %s129
      %p133 = scmp.eq.s32.totalorder %s18, 0
      %p134 = por %p132, %p133
      %p135 = scmp.ne.s32.totalorder %s127, %s129
      %p136 = scmp.eq.s32.totalorder %s23, 1
      %p137 = por %p135, %p136
      %p138 = scmp.ne.s32.totalorder %s129, %s130
      %p139 = scmp.eq.s32.totalorder %s23, 0
      %p140 = por %p138, %p139
      %p141 = scmp.ne.s32.totalorder %s129, %s130
      %p142 = scmp.eq.s32.totalorder %s24, 1
      %p143 = por %p141, %p142
      %p145 = scmp.ne.s32.totalorder %s130, %s144
      %p146 = scmp.eq.s32.totalorder %s24, 0
      %p147 = por %p145, %p146
      %s148 = ssub.s32 %s25, %s37
      %s149 = ssub.s32 %s26, %s33
      %s150 = sor.u32 %s148, %s149
      %p151 = scmp.eq.s32.totalorder %s150, 0
      %s153 = sadd.s32 %s152, 1
      %s154 = scalar_select %p151, %s152, %s153
      %p157 = pneg %p151
      %p158 = scmp.eq.s32.totalorder %s18, 1
      %p159 = por %p157, %p158
      %p160 = scmp.ne.s32.totalorder %s152, %s155
      %p161 = scmp.eq.s32.totalorder %s18, 0
      %p162 = por %p160, %p161
      %p163 = scmp.ne.s32.totalorder %s152, %s155
      %p164 = scmp.eq.s32.totalorder %s23, 1
      %p165 = por %p163, %p164
      %p166 = scmp.ne.s32.totalorder %s155, %s156
      %p167 = scmp.eq.s32.totalorder %s23, 0
      %p168 = por %p166, %p167
      %p169 = scmp.ne.s32.totalorder %s155, %s156
      %p170 = scmp.eq.s32.totalorder %s24, 1
      %p171 = por %p169, %p170
      %p173 = scmp.ne.s32.totalorder %s156, %s172
      %p174 = scmp.eq.s32.totalorder %s24, 0
      %p175 = por %p173, %p174
      %p176 = scmp.le.s32.totalorder 1, %s18
      %p177 = scmp.lt.s32.totalorder %s18, 3
      %p178 = pnand %p176, %p177
      %p179 = pneg %p178
      // Predicated region
      $region9: #{tpu_custom_call.1} parent=5 // pred_check
        _
      $region10: #{tpu_custom_call.1} parent=5 // pred_check_branch
        %181 = sbr.rel (%p178) target = $region12
      $region11: #{tpu_custom_call.1} parent=5 // pred_region
        %s182 = ssub.s32 %s18, 1
        // Predicated region
        $region13: #{tpu_custom_call.1} parent=11 // pred_check
          %p183 = pneg %p77
        $region14: #{tpu_custom_call.1} parent=11 // pred_check_branch
          %185 = sbr.rel (%p183) target = $region16
        $region15: #{tpu_custom_call.1} parent=11 // pred_region
          %187 = vsyncadd [#allocation7], 0
          %s189 = sshll.u32 %s1, 4
          %s190 = int_to_ptr.hbm [resolvable:$true] %s189
          %s191 = sshll.u32 [#allocation6], 4
          %s192 = int_to_ptr.vmem [resolvable:$true] %s191
          %194 = dma.hbm_to_vmem [thread:$0]  %s190, 16, %s192, [#allocation7]
        $region16: #{tpu_custom_call.1} parent=11 // pred_fallthru
          _
        // Predicated region
        $region17: #{tpu_custom_call.1} parent=11 // pred_check
          %p195 = pneg %p98
        $region18: #{tpu_custom_call.1} parent=11 // pred_check_branch
          %197 = sbr.rel (%p195) target = $region20
        $region19: #{tpu_custom_call.1} parent=11 // pred_region
          _
        $region20: #{tpu_custom_call.1} parent=11 // pred_fallthru
          _
        // Predicated region
        $region21: #{tpu_custom_call.1} parent=11 // pred_check
          %p198 = pneg %p119
        $region22: #{tpu_custom_call.1} parent=11 // pred_check_branch
          %200 = sbr.rel (%p198) target = $region24
        $region23: #{tpu_custom_call.1} parent=11 // pred_region
          %202 = vsyncadd [#allocation7], 0
          %s203 = sshll.u32 %s3, 4
          %s204 = int_to_ptr.hbm [resolvable:$true] %s203
          %s205 = sshll.u32 [#allocation8], 4
          %s206 = int_to_ptr.vmem [resolvable:$true] %s205
          %211 = dma.hbm_to_vmem [thread:$0]  %s204, 256, %s206, [#allocation7], 64, 64, 4
        $region24: #{tpu_custom_call.1} parent=11 // pred_fallthru
          _
        // Predicated region
        $region25: #{tpu_custom_call.1} parent=11 // pred_check
          %p212 = pneg %p140
        $region26: #{tpu_custom_call.1} parent=11 // pred_check_branch
          %214 = sbr.rel (%p212) target = $region28
        $region27: #{tpu_custom_call.1} parent=11 // pred_region
          _
        $region28: #{tpu_custom_call.1} parent=11 // pred_fallthru
          _
      $region12: #{tpu_custom_call.1} parent=5 // pred_fallthru
        _
      %p215 = scmp.lt.s32.totalorder %s18, 2
      // Predicated region
      $region29: #{tpu_custom_call.1} parent=5 // pred_check
        %p216 = pneg %p215
      $region30: #{tpu_custom_call.1} parent=5 // pred_check_branch
        %218 = sbr.rel (%p216) target = $region32
      $region31: #{tpu_custom_call.1} parent=5 // pred_region
        // Predicated region
        $region33: #{tpu_custom_call.1} parent=31 // pred_check
          %p219 = pneg %p50
        $region34: #{tpu_custom_call.1} parent=31 // pred_check_branch
          %221 = sbr.rel (%p219) target = $region36
        $region35: #{tpu_custom_call.1} parent=31 // pred_region
          %s222 = sand.u32 %s40, 1
          %s223 = scalar_lea.sflag [#allocation4], %s222
          %s224 = sand.u32 %s40, 1
          %s225 = smul.addr %s224, 8
          %s226 = scalar_lea.vmem [#allocation3], %s225
          %228 = vsyncadd %s223, 0
          %s229 = smul.addr %s25, 8
          %s230 = scalar_lea.hbm %s0, %s229
          %s232 = sshll.u32 %s230, 4
          %s233 = int_to_ptr.hbm [resolvable:$true] %s232
          %s234 = sshll.u32 %s226, 4
          %s235 = int_to_ptr.vmem [resolvable:$true] %s234
          %237 = dma.hbm_to_vmem [thread:$0]  %s233, 128, %s235, %s223
        $region36: #{tpu_custom_call.1} parent=31 // pred_fallthru
          _
      $region32: #{tpu_custom_call.1} parent=5 // pred_fallthru
        _
      %p238 = scmp.le.s32.totalorder 1, %s18
      %p239 = scmp.lt.s32.totalorder %s18, 3
      %p240 = pnand %p238, %p239
      %p241 = pneg %p240
      // Predicated region
      $region37: #{tpu_custom_call.1} parent=5 // pred_check
        _
      $region38: #{tpu_custom_call.1} parent=5 // pred_check_branch
        %243 = sbr.rel (%p240) target = $region40
      $region39: #{tpu_custom_call.1} parent=5 // pred_region
        %s244 = ssub.s32 %s18, 1
        %s245 = sand.u32 %s43, 1
        %s246 = scalar_lea.sflag [#allocation4], %s245
        %s247 = sand.u32 %s43, 1
        %s248 = smul.addr %s247, 8
        %s249 = scalar_lea.vmem [#allocation3], %s248
        // Predicated region
        $region41: #{tpu_custom_call.1} parent=39 // pred_check
          %p250 = pneg %p56
        $region42: #{tpu_custom_call.1} parent=39 // pred_check_branch
          %252 = sbr.rel (%p250) target = $region44
        $region43: #{tpu_custom_call.1} parent=39 // pred_region
          %254 = dma.done %s246, 128
        $region44: #{tpu_custom_call.1} parent=39 // pred_fallthru
          _
        // Predicated region
        $region45: #{tpu_custom_call.1} parent=39 // pred_check
          %p255 = pneg %p77
        $region46: #{tpu_custom_call.1} parent=39 // pred_check_branch
          %257 = sbr.rel (%p255) target = $region48
        $region47: #{tpu_custom_call.1} parent=39 // pred_region
          %259 = dma.done [#allocation7], 16
        $region48: #{tpu_custom_call.1} parent=39 // pred_fallthru
          _
        // Predicated region
        $region49: #{tpu_custom_call.1} parent=39 // pred_check
          %p260 = pneg %p119
        $region50: #{tpu_custom_call.1} parent=39 // pred_check_branch
          %262 = sbr.rel (%p260) target = $region52
        $region51: #{tpu_custom_call.1} parent=39 // pred_region
          %264 = dma.done [#allocation7], 256
        $region52: #{tpu_custom_call.1} parent=39 // pred_fallthru
          _
        %s265 = sand.u32 %s43, 1
        %s266 = scalar_lea.sflag [#allocation4], %s265
        %s267 = sand.u32 %s43, 1
        %s268 = smul.addr %s267, 8
        %s269 = scalar_lea.vmem [#allocation3], %s268
        %p270 = pneg %p56
        %p271 = pneg %p53
        %p272 = pneg %p77
        %p273 = pneg %p74
        %p274 = pneg %p98
        %p275 = pneg %p95
        %p276 = pneg %p119
        %p277 = pneg %p116
        %p278 = pneg %p140
        %p279 = pneg %p137
        %p280 = pneg %p168
        %p281 = pneg %p165
        %s282 = sand.u32 %s155, 1
        %s283 = scalar_lea.sflag [#allocation5], %s282
        %s284 = sand.u32 %s155, 1
        %s285 = smul.addr %s284, 8
        %s286 = scalar_lea.vmem [#allocation9], %s285
        %p288 = scmp.eq.s32.totalorder %s28, 0
        // Predicated region
        $region53: #{tpu_custom_call.1} parent=39 // pred_check
          %p289 = pneg %p288
        $region54: #{tpu_custom_call.1} parent=39 // pred_check_branch
          %291 = sbr.rel (%p289) target = $region56
        $region55: #{tpu_custom_call.1} parent=39 // pred_region
          %v292 = vld [vmem:[%s249] sm:$0xff]
          %vm293 = vcmask 261120
          %v294 = vsel %vm293, %v292, 0.0
          %295 = vadd.xlane.f32.xlu0 %v294
          %v296 = vpop.xlane.xlu0 %295
          %v297 = vmul.f32 %v296, 0.03125
          %v298 = vsub.f32 %v292, %v297
          %v299 = vmul.f32 %v298, %v298
          %v300 = vsel %vm293, %v299, 0.0
          %301 = vadd.xlane.f32.xlu0 %v300
          %v302 = vpop.xlane.xlu0 %301
          %v303 = vmul.f32 %v302, 0.032258064
          %v304 = vrsqrt.pop %v303
          %v305 = vmul.f32 %v304, %v303
          %v306 = vmul.f32 %v305, %v304
          %v307 = vmul.f32 0.5, %v306
          %v308 = vsub.f32 1.5, %v307
          %v309 = vmul.f32 %v304, %v308
          %v310 = vmul.f32 %v303, %v309
          %vm311 = vcmp.eq.f32.partialorder %v303, inf
          %v312 = vsel %vm311, %v303, %v310
          %vm313 = vcmp.eq.f32.partialorder %v303, 0.0
          %v314 = vand.u32 %v303, 2147483648
          %v315 = vsel %vm313, %v314, %v312
          %v316 = vadd.f32 %v315, 1e-06
          %v317 = vrcp.pop %v316
          %v318 = vmul.f32 %v316, %v317
          %v319 = vsub.f32 1.0, %v318
          %v320 = vmul.f32 %v317, %v319
          %v321 = vadd.f32 %v317, %v320
          %vm322 = vweird.f32 %v316
          %vm323 = vweird.f32 %v317
          %vm324 = vmor %vm322, %vm323
          %v325 = vsel %vm324, %v317, %v321
          %v326 = vand.u32 2147483647, %v316
          %vm327 = vcmp.eq.f32.partialorder %v326, 8.507059e+37
          %v328 = vand.u32 %v316, 2147483648
          %v329 = vor.u32 1.1754944e-38, %v328
          %v330 = vsel %vm327, %v329, %v325
          %v331 = vmul.f32 1.0, %v330
          %v332 = vld [vmem:[#allocation6] sm:$0x1]
          %v334 = vperm.slane %v332, 0
          %v336 = vmul.f32 %v334, %v298
          %v337 = vmul.f32 %v336, %v331
          %v338 = vld [vmem:[%s2] sm:$0x1]
          %v340 = vperm.slane %v338, 0
          %v342 = vadd.f32 %v337, %v340
          %v343 = vpack.c.bf16 %v342, %v342
          %vm344 = vcmask 257024
          %345 = vst.msk [vmem:[#allocation2] sm:$0xf] %vm344, %v343
        $region56: #{tpu_custom_call.1} parent=39 // pred_fallthru
          _
        %v346 = vld [vmem:[#allocation2] sm:$0xf]
        %v347 = vld [vmem:[#allocation8] sm:$0xf]
        %v348 = vld [vmem:[#allocation8 + $0x4] sm:$0xf]
        %v349 = vld [vmem:[#allocation8 + $0x8] sm:$0xf]
        %v350 = vld [vmem:[#allocation8 + $0xc] sm:$0xf]
        %v351 = vld [vmem:[%s4] sm:$0x1]
        %v353 = vperm.slane %v351, 0
        %v359 = vunpack.c.l.b16 %v347
        %v360 = vunpack.c.l.b16 %v348
        %v361 = vunpack.c.l.b16 %v349
        %v362 = vunpack.c.l.b16 %v350
        %v363 = vpack.c.b16 %v360, %v359
        %v364 = vpack.c.b16 %v362, %v361
        %vm367 = vcmask 261120
        %v369 = vsel %vm367, %v346, 0
        %371 = vmatpush.bf16.msra.mxu0 0
        %372 = vmatpush.bf16.msra.mxu0 0
        %373 = vmatpush.bf16.msra.mxu0 0
        %374 = vmatpush.bf16.msra.mxu0 0
        %375 = vmatpush.bf16.msra.mxu0 0
        %376 = vmatpush.bf16.msra.mxu0 0
        %377 = vmatpush.bf16.msra.mxu0 %v364
        %378 = vmatpush.bf16.msra.mxu0 %v363
        %379 = vmatmul.bf16.gmra.mxu0 %v369
        %v380 = vpop.f32.mrf.mxu0
        %v381 = vadd.f32 %v353, %v380
        %v382 = vpop.f32.mrf.mxu0
        %383 = vdwg.mxu0
        %v384 = vld [vmem:[%s249] sm:$0xff]
        %v385 = vadd.f32 %v384, %v381
        %386 = vst.msk [vmem:[%s286] sm:$0xff] %vm367, %v385
        %s387 = sand.u32 %s155, 1
        %s388 = scalar_lea.sflag [#allocation5], %s387
        %s389 = sand.u32 %s155, 1
        %s390 = smul.addr %s389, 8
        %s391 = scalar_lea.vmem [#allocation9], %s390
        // Predicated region
        $region57: #{tpu_custom_call.1} parent=39 // pred_check
          %p392 = pneg %p165
        $region58: #{tpu_custom_call.1} parent=39 // pred_check_branch
          %394 = sbr.rel (%p392) target = $region60
        $region59: #{tpu_custom_call.1} parent=39 // pred_region
          %396 = vsyncadd %s388, 0
          %s397 = sadd.s32 %s28, %s27
          %s398 = smul.addr %s397, 8
          %s399 = scalar_lea.hbm %s5, %s398
          %s401 = sshll.u32 %s391, 4
          %s402 = int_to_ptr.vmem [resolvable:$true] %s401
          %s403 = sshll.u32 %s399, 4
          %s404 = int_to_ptr.hbm [resolvable:$true] %s403
          %406 = dma.vmem_to_hbm [thread:$0]  %s402, 128, %s404, %s388
        $region60: #{tpu_custom_call.1} parent=39 // pred_fallthru
          _
      $region40: #{tpu_custom_call.1} parent=5 // pred_fallthru
        _
      %p407 = scmp.le.s32.totalorder 2, %s18
      // Predicated region
      $region61: #{tpu_custom_call.1} parent=5 // pred_check
        %p408 = pneg %p407
      $region62: #{tpu_custom_call.1} parent=5 // pred_check_branch
        %410 = sbr.rel (%p408) target = $region64
      $region63: #{tpu_custom_call.1} parent=5 // pred_region
        %s411 = ssub.s32 %s18, 2
        // Predicated region
        $region65: #{tpu_custom_call.1} parent=63 // pred_check
          %p412 = pneg %p171
        $region66: #{tpu_custom_call.1} parent=63 // pred_check_branch
          %414 = sbr.rel (%p412) target = $region68
        $region67: #{tpu_custom_call.1} parent=63 // pred_region
          %s415 = sand.u32 %s156, 1
          %s416 = scalar_lea.sflag [#allocation5], %s415
          %s417 = sand.u32 %s156, 1
          %s418 = smul.addr %s417, 8
          %s419 = scalar_lea.vmem [#allocation9], %s418
          %421 = dma.done %s416, 128
        $region68: #{tpu_custom_call.1} parent=63 // pred_fallthru
          _
      $region64: #{tpu_custom_call.1} parent=5 // pred_fallthru
        _
    $region6: #{tpu_custom_call.1} parent=1 // loop_footer
      %s22 = sadd.s32 1, %s18
    $region7: #{tpu_custom_call.1} parent=1 // loop_footer_branch
      %17 = sbr.rel target = $region3
    $region8: #{tpu_custom_call.1} parent=1 // loop_exit
      _
    %422 = vsyncpa [#allocation4], 1
    %s423 = scalar_lea.sflag [#allocation4], 1
    %424 = vsyncpa %s423, 1
    %425 = vsyncpa [#allocation7], 1
    %426 = vsyncpa [#allocation5], 1
    %s427 = scalar_lea.sflag [#allocation5], 1
    %428 = vsyncpa %s427, 1

// kernel: tpu_custom_call.1
$region0: #{tpu_custom_call.1}
  #allocation0 [shape = 'u32[]', space=smem, size = 0x4, offset = 0x4, fixed_abs, tag = 'smem constant byte address 0x4 - core index']
  #allocation1 [shape = 'u32[72,128]{1,0:T(1,128)}', space=vmem, size = 0x9000, scoped, tag = 'internal scratch']
  #allocation2 [shape = 'bf16[8,32]{1,0:T(8,128)(2,1)}', space=vmem, size = 0x800, scoped, tag = 'scratch operand']
  %s0 = inlined_call_operand.hbm [shape: f32[16,32], index: 0, kind: input, shape index: {}]
  %s1 = inlined_call_operand.hbm [shape: f32[1,32], index: 1, kind: input, shape index: {}]
  %s2 = inlined_call_operand.vmem [shape: f32[1,32], index: 2, kind: input, shape index: {}]
  %s3 = inlined_call_operand.hbm [shape: bf16[32,32], index: 3, kind: input, shape index: {}]
  %s4 = inlined_call_operand.vmem [shape: f32[1,32], index: 4, kind: input, shape index: {}]
  %s5 = inlined_call_operand.hbm [shape: f32[16,32], index: 5, kind: output, shape index: {}]
  %s6 = sld [smem:[#allocation0]]
  $region69: #{tpu_custom_call.1} parent=0
    _
  %s8 = ssub.s32 1, %s6
  %s9 = scalar_select 0, %s8, %s6
  $region1: #{tpu_custom_call.1} parent=0
    #allocation3 [shape = 'u8[8192]{0}', space=vmem, size = 0x2000, scoped, tag = 'input window, operand 0']
    #allocation4 [shape = 's32[2]{0}', space=sflag, size = 0x8, scoped, tag = 'scoped memory for tpu_custom_call.1']
    #allocation5 [shape = 's32[2]{0}', space=sflag, size = 0x8, scoped, tag = 'scoped memory for tpu_custom_call.1']
    #allocation6 [shape = 'u8[512]{0}', space=vmem, size = 0x400, scoped, tag = 'input window, operand 1, single buffered']
    #allocation7 [shape = 's32[1]{0}', space=sflag, size = 0x4, scoped, tag = 'scoped memory for tpu_custom_call.1']
    #allocation8 [shape = 'u8[8192]{0}', space=vmem, size = 0x2000, scoped, tag = 'input window, operand 3, single buffered']
    #allocation9 [shape = 'u8[8192]{0}', space=vmem, size = 0x2000, scoped, tag = 'output window, operand 0']
    %10 = vsyncpa [#allocation4], 0
    %s11 = scalar_lea.sflag [#allocation4], 1
    %12 = vsyncpa %s11, 0
    %13 = vsyncpa [#allocation7], 0
    %14 = vsyncpa [#allocation5], 0
    %s15 = scalar_lea.sflag [#allocation5], 1
    %16 = vsyncpa %s15, 0
    loop: start=0, step=1, limit=4
    $region2: #{tpu_custom_call.1} parent=1 // loop_pre_header
      _
    $region3: #{tpu_custom_call.1} parent=1 // loop_header
      %s18 = sphi 0, %s22
      %p19 = scmp.ge.s32.totalorder %s18, 4
      %s25 = sphi 0, %s37
      %s26 = sphi 0, %s33
      %s27 = sphi 0, %s25
      %s28 = sphi 0, %s26
      %s29 = sphi 0, %s27
      %s30 = sphi 0, %s28
      %s40 = sphi 0, %s42
      %s43 = sphi 0, %s40
      %s44 = sphi 0, %s43
      %s60 = sphi 0, %s44
      %s64 = sphi 0, %s64
      %s66 = sphi 0, %s64
      %s67 = sphi 0, %s66
      %s81 = sphi 0, %s67
      %s85 = sphi 0, %s85
      %s87 = sphi 0, %s85
      %s88 = sphi 0, %s87
      %s102 = sphi 0, %s88
      %s106 = sphi 0, %s106
      %s108 = sphi 0, %s106
      %s109 = sphi 0, %s108
      %s123 = sphi 0, %s109
      %s127 = sphi 0, %s127
      %s129 = sphi 0, %s127
      %s130 = sphi 0, %s129
      %s144 = sphi 0, %s130
      %s152 = sphi 0, %s154
      %s155 = sphi 0, %s152
      %s156 = sphi 0, %s155
      %s172 = sphi 0, %s156
    $region4: #{tpu_custom_call.1} parent=1 // loop_header_branch
      %21 = sbr.rel (%p19) target = $region8
    $region5: #{tpu_custom_call.1} parent=1 // loop_body
      %s23 = ssub.s32 %s18, 1
      %s24 = ssub.s32 %s18, 2
      %s31 = sadd.s32 1, %s26
      %p32 = scmp.ge.s32.totalorder %s31, 1
      %s33 = scalar_select %p32, 0, %s31
      %s34 = sadd.s32 1, %s25
      %s35 = scalar_select %p32, %s34, %s25
      %p36 = scmp.ge.s32.totalorder %s35, 2
      %s37 = scalar_select %p36, 0, %s35
      %s38 = ssub.s32 %s25, %s37
      %p39 = scmp.eq.s32.totalorder %s38, 0
      %s41 = sadd.s32 %s40, 1
      %s42 = scalar_select %p39, %s40, %s41
      %p45 = pneg %p39
      %p46 = scmp.eq.s32.totalorder %s18, 1
      %p47 = por %p45, %p46
      %p48 = scmp.ne.s32.totalorder %s40, %s43
      %p49 = scmp.eq.s32.totalorder %s18, 0
      %p50 = por %p48, %p49
      %p51 = scmp.ne.s32.totalorder %s40, %s43
      %p52 = scmp.eq.s32.totalorder %s23, 1
      %p53 = por %p51, %p52
      %p54 = scmp.ne.s32.totalorder %s43, %s44
      %p55 = scmp.eq.s32.totalorder %s23, 0
      %p56 = por %p54, %p55
      %p57 = scmp.ne.s32.totalorder %s43, %s44
      %p58 = scmp.eq.s32.totalorder %s24, 1
      %p59 = por %p57, %p58
      %p61 = scmp.ne.s32.totalorder %s44, %s60
      %p62 = scmp.eq.s32.totalorder %s24, 0
      %p63 = por %p61, %p62
      %s65 = sadd.s32 %s64, 1
      %p68 = scmp.eq.s32.totalorder %s18, 1
      %p69 = scmp.ne.s32.totalorder %s64, %s66
      %p70 = scmp.eq.s32.totalorder %s18, 0
      %p71 = por %p69, %p70
      %p72 = scmp.ne.s32.totalorder %s64, %s66
      %p73 = scmp.eq.s32.totalorder %s23, 1
      %p74 = por %p72, %p73
      %p75 = scmp.ne.s32.totalorder %s66, %s67
      %p76 = scmp.eq.s32.totalorder %s23, 0
      %p77 = por %p75, %p76
      %p78 = scmp.ne.s32.totalorder %s66, %s67
      %p79 = scmp.eq.s32.totalorder %s24, 1
      %p80 = por %p78, %p79
      %p82 = scmp.ne.s32.totalorder %s67, %s81
      %p83 = scmp.eq.s32.totalorder %s24, 0
      %p84 = por %p82, %p83
      %s86 = sadd.s32 %s85, 1
      %p89 = scmp.eq.s32.totalorder %s18, 1
      %p90 = scmp.ne.s32.totalorder %s85, %s87
      %p91 = scmp.eq.s32.totalorder %s18, 0
      %p92 = por %p90, %p91
      %p93 = scmp.ne.s32.totalorder %s85, %s87
      %p94 = scmp.eq.s32.totalorder %s23, 1
      %p95 = por %p93, %p94
      %p96 = scmp.ne.s32.totalorder %s87, %s88
      %p97 = scmp.eq.s32.totalorder %s23, 0
      %p98 = por %p96, %p97
      %p99 = scmp.ne.s32.totalorder %s87, %s88
      %p100 = scmp.eq.s32.totalorder %s24, 1
      %p101 = por %p99, %p100
      %p103 = scmp.ne.s32.totalorder %s88, %s102
      %p104 = scmp.eq.s32.totalorder %s24, 0
      %p105 = por %p103, %p104
      %s107 = sadd.s32 %s106, 1
      %p110 = scmp.eq.s32.totalorder %s18, 1
      %p111 = scmp.ne.s32.totalorder %s106, %s108
      %p112 = scmp.eq.s32.totalorder %s18, 0
      %p113 = por %p111, %p112
      %p114 = scmp.ne.s32.totalorder %s106, %s108
      %p115 = scmp.eq.s32.totalorder %s23, 1
      %p116 = por %p114, %p115
      %p117 = scmp.ne.s32.totalorder %s108, %s109
      %p118 = scmp.eq.s32.totalorder %s23, 0
      %p119 = por %p117, %p118
      %p120 = scmp.ne.s32.totalorder %s108, %s109
      %p121 = scmp.eq.s32.totalorder %s24, 1
      %p122 = por %p120, %p121
      %p124 = scmp.ne.s32.totalorder %s109, %s123
      %p125 = scmp.eq.s32.totalorder %s24, 0
      %p126 = por %p124, %p125
      %s128 = sadd.s32 %s127, 1
      %p131 = scmp.eq.s32.totalorder %s18, 1
      %p132 = scmp.ne.s32.totalorder %s127, %s129
      %p133 = scmp.eq.s32.totalorder %s18, 0
      %p134 = por %p132, %p133
      %p135 = scmp.ne.s32.totalorder %s127, %s129
      %p136 = scmp.eq.s32.totalorder %s23, 1
      %p137 = por %p135, %p136
      %p138 = scmp.ne.s32.totalorder %s129, %s130
      %p139 = scmp.eq.s32.totalorder %s23, 0
      %p140 = por %p138, %p139
      %p141 = scmp.ne.s32.totalorder %s129, %s130
      %p142 = scmp.eq.s32.totalorder %s24, 1
      %p143 = por %p141, %p142
      %p145 = scmp.ne.s32.totalorder %s130, %s144
      %p146 = scmp.eq.s32.totalorder %s24, 0
      %p147 = por %p145, %p146
      %s148 = ssub.s32 %s25, %s37
      %s149 = ssub.s32 %s26, %s33
      %s150 = sor.u32 %s148, %s149
      %p151 = scmp.eq.s32.totalorder %s150, 0
      %s153 = sadd.s32 %s152, 1
      %s154 = scalar_select %p151, %s152, %s153
      %p157 = pneg %p151
      %p158 = scmp.eq.s32.totalorder %s18, 1
      %p159 = por %p157, %p158
      %p160 = scmp.ne.s32.totalorder %s152, %s155
      %p161 = scmp.eq.s32.totalorder %s18, 0
      %p162 = por %p160, %p161
      %p163 = scmp.ne.s32.totalorder %s152, %s155
      %p164 = scmp.eq.s32.totalorder %s23, 1
      %p165 = por %p163, %p164
      %p166 = scmp.ne.s32.totalorder %s155, %s156
      %p167 = scmp.eq.s32.totalorder %s23, 0
      %p168 = por %p166, %p167
      %p169 = scmp.ne.s32.totalorder %s155, %s156
      %p170 = scmp.eq.s32.totalorder %s24, 1
      %p171 = por %p169, %p170
      %p173 = scmp.ne.s32.totalorder %s156, %s172
      %p174 = scmp.eq.s32.totalorder %s24, 0
      %p175 = por %p173, %p174
      %p176 = scmp.le.s32.totalorder 1, %s18
      %p177 = scmp.lt.s32.totalorder %s18, 3
      %p178 = pnand %p176, %p177
      %p179 = pneg %p178
      // Predicated region
      $region9: #{tpu_custom_call.1} parent=5 // pred_check
        _
      $region10: #{tpu_custom_call.1} parent=5 // pred_check_branch
        %181 = sbr.rel (%p178) target = $region12
      $region11: #{tpu_custom_call.1} parent=5 // pred_region
        %s182 = ssub.s32 %s18, 1
        // Predicated region
        $region13: #{tpu_custom_call.1} parent=11 // pred_check
          %p183 = pneg %p77
        $region14: #{tpu_custom_call.1} parent=11 // pred_check_branch
          %185 = sbr.rel (%p183) target = $region16
        $region15: #{tpu_custom_call.1} parent=11 // pred_region
          %187 = vsyncadd [#allocation7], 0
          %s189 = sshll.u32 %s1, 4
          %s190 = int_to_ptr.hbm [resolvable:$true] %s189
          %s191 = sshll.u32 [#allocation6], 4
          %s192 = int_to_ptr.vmem [resolvable:$true] %s191
          %194 = dma.hbm_to_vmem [thread:$0]  %s190, 16, %s192, [#allocation7]
        $region16: #{tpu_custom_call.1} parent=11 // pred_fallthru
          _
        // Predicated region
        $region17: #{tpu_custom_call.1} parent=11 // pred_check
          %p195 = pneg %p98
        $region18: #{tpu_custom_call.1} parent=11 // pred_check_branch
          %197 = sbr.rel (%p195) target = $region20
        $region19: #{tpu_custom_call.1} parent=11 // pred_region
          _
        $region20: #{tpu_custom_call.1} parent=11 // pred_fallthru
          _
        // Predicated region
        $region21: #{tpu_custom_call.1} parent=11 // pred_check
          %p198 = pneg %p119
        $region22: #{tpu_custom_call.1} parent=11 // pred_check_branch
          %200 = sbr.rel (%p198) target = $region24
        $region23: #{tpu_custom_call.1} parent=11 // pred_region
          %202 = vsyncadd [#allocation7], 0
          %s203 = sshll.u32 %s3, 4
          %s204 = int_to_ptr.hbm [resolvable:$true] %s203
          %s205 = sshll.u32 [#allocation8], 4
          %s206 = int_to_ptr.vmem [resolvable:$true] %s205
          %211 = dma.hbm_to_vmem [thread:$0]  %s204, 256, %s206, [#allocation7], 64, 64, 4
        $region24: #{tpu_custom_call.1} parent=11 // pred_fallthru
          _
        // Predicated region
        $region25: #{tpu_custom_call.1} parent=11 // pred_check
          %p212 = pneg %p140
        $region26: #{tpu_custom_call.1} parent=11 // pred_check_branch
          %214 = sbr.rel (%p212) target = $region28
        $region27: #{tpu_custom_call.1} parent=11 // pred_region
          _
        $region28: #{tpu_custom_call.1} parent=11 // pred_fallthru
          _
      $region12: #{tpu_custom_call.1} parent=5 // pred_fallthru
        _
      %p215 = scmp.lt.s32.totalorder %s18, 2
      // Predicated region
      $region29: #{tpu_custom_call.1} parent=5 // pred_check
        %p216 = pneg %p215
      $region30: #{tpu_custom_call.1} parent=5 // pred_check_branch
        %218 = sbr.rel (%p216) target = $region32
      $region31: #{tpu_custom_call.1} parent=5 // pred_region
        // Predicated region
        $region33: #{tpu_custom_call.1} parent=31 // pred_check
          %p219 = pneg %p50
        $region34: #{tpu_custom_call.1} parent=31 // pred_check_branch
          %221 = sbr.rel (%p219) target = $region36
        $region35: #{tpu_custom_call.1} parent=31 // pred_region
          %s222 = sand.u32 %s40, 1
          %s223 = scalar_lea.sflag [#allocation4], %s222
          %s224 = sand.u32 %s40, 1
          %s225 = smul.addr %s224, 8
          %s226 = scalar_lea.vmem [#allocation3], %s225
          %228 = vsyncadd %s223, 0
          %s229 = smul.addr %s25, 8
          %s230 = scalar_lea.hbm %s0, %s229
          %s232 = sshll.u32 %s230, 4
          %s233 = int_to_ptr.hbm [resolvable:$true] %s232
          %s234 = sshll.u32 %s226, 4
          %s235 = int_to_ptr.vmem [resolvable:$true] %s234
          %237 = dma.hbm_to_vmem [thread:$0]  %s233, 128, %s235, %s223
        $region36: #{tpu_custom_call.1} parent=31 // pred_fallthru
          _
      $region32: #{tpu_custom_call.1} parent=5 // pred_fallthru
        _
      %p238 = scmp.le.s32.totalorder 1, %s18
      %p239 = scmp.lt.s32.totalorder %s18, 3
      %p240 = pnand %p238, %p239
      %p241 = pneg %p240
      // Predicated region
      $region37: #{tpu_custom_call.1} parent=5 // pred_check
        _
      $region38: #{tpu_custom_call.1} parent=5 // pred_check_branch
        %243 = sbr.rel (%p240) target = $region40
      $region39: #{tpu_custom_call.1} parent=5 // pred_region
        %s244 = ssub.s32 %s18, 1
        %s245 = sand.u32 %s43, 1
        %s246 = scalar_lea.sflag [#allocation4], %s245
        %s247 = sand.u32 %s43, 1
        %s248 = smul.addr %s247, 8
        %s249 = scalar_lea.vmem [#allocation3], %s248
        // Predicated region
        $region41: #{tpu_custom_call.1} parent=39 // pred_check
          %p250 = pneg %p56
        $region42: #{tpu_custom_call.1} parent=39 // pred_check_branch
          %252 = sbr.rel (%p250) target = $region44
        $region43: #{tpu_custom_call.1} parent=39 // pred_region
          %254 = dma.done %s246, 128
        $region44: #{tpu_custom_call.1} parent=39 // pred_fallthru
          _
        // Predicated region
        $region45: #{tpu_custom_call.1} parent=39 // pred_check
          %p255 = pneg %p77
        $region46: #{tpu_custom_call.1} parent=39 // pred_check_branch
          %257 = sbr.rel (%p255) target = $region48
        $region47: #{tpu_custom_call.1} parent=39 // pred_region
          %259 = dma.done [#allocation7], 16
        $region48: #{tpu_custom_call.1} parent=39 // pred_fallthru
          _
        // Predicated region
        $region49: #{tpu_custom_call.1} parent=39 // pred_check
          %p260 = pneg %p119
        $region50: #{tpu_custom_call.1} parent=39 // pred_check_branch
          %262 = sbr.rel (%p260) target = $region52
        $region51: #{tpu_custom_call.1} parent=39 // pred_region
          %264 = dma.done [#allocation7], 256
        $region52: #{tpu_custom_call.1} parent=39 // pred_fallthru
          _
        %s265 = sand.u32 %s43, 1
        %s266 = scalar_lea.sflag [#allocation4], %s265
        %s267 = sand.u32 %s43, 1
        %s268 = smul.addr %s267, 8
        %s269 = scalar_lea.vmem [#allocation3], %s268
        %p270 = pneg %p56
        %p271 = pneg %p53
        %p272 = pneg %p77
        %p273 = pneg %p74
        %p274 = pneg %p98
        %p275 = pneg %p95
        %p276 = pneg %p119
        %p277 = pneg %p116
        %p278 = pneg %p140
        %p279 = pneg %p137
        %p280 = pneg %p168
        %p281 = pneg %p165
        %s282 = sand.u32 %s155, 1
        %s283 = scalar_lea.sflag [#allocation5], %s282
        %s284 = sand.u32 %s155, 1
        %s285 = smul.addr %s284, 8
        %s286 = scalar_lea.vmem [#allocation9], %s285
        %p288 = scmp.eq.s32.totalorder %s28, 0
        // Predicated region
        $region53: #{tpu_custom_call.1} parent=39 // pred_check
          %p289 = pneg %p288
        $region54: #{tpu_custom_call.1} parent=39 // pred_check_branch
          %291 = sbr.rel (%p289) target = $region56
        $region55: #{tpu_custom_call.1} parent=39 // pred_region
          %v292 = vld [vmem:[%s249] sm:$0xff]
          %vm293 = vcmask 261120
          %v294 = vsel %vm293, %v292, 0.0
          %295 = vadd.xlane.f32.xlu0 %v294
          %v296 = vpop.xlane.xlu0 %295
          %v297 = vmul.f32 %v296, 0.03125
          %v298 = vsub.f32 %v292, %v297
          %v299 = vmul.f32 %v298, %v298
          %v300 = vsel %vm293, %v299, 0.0
          %301 = vadd.xlane.f32.xlu0 %v300
          %v302 = vpop.xlane.xlu0 %301
          %v303 = vmul.f32 %v302, 0.032258064
          %v304 = vrsqrt.pop %v303
          %v305 = vmul.f32 %v304, %v303
          %v306 = vmul.f32 %v305, %v304
          %v307 = vmul.f32 0.5, %v306
          %v308 = vsub.f32 1.5, %v307
          %v309 = vmul.f32 %v304, %v308
          %v310 = vmul.f32 %v303, %v309
          %vm311 = vcmp.eq.f32.partialorder %v303, inf
          %v312 = vsel %vm311, %v303, %v310
          %vm313 = vcmp.eq.f32.partialorder %v303, 0.0
          %v314 = vand.u32 %v303, 2147483648
          %v315 = vsel %vm313, %v314, %v312
          %v316 = vadd.f32 %v315, 1e-06
          %v317 = vrcp.pop %v316
          %v318 = vmul.f32 %v316, %v317
          %v319 = vsub.f32 1.0, %v318
          %v320 = vmul.f32 %v317, %v319
          %v321 = vadd.f32 %v317, %v320
          %vm322 = vweird.f32 %v316
          %vm323 = vweird.f32 %v317
          %vm324 = vmor %vm322, %vm323
          %v325 = vsel %vm324, %v317, %v321
          %v326 = vand.u32 2147483647, %v316
          %vm327 = vcmp.eq.f32.partialorder %v326, 8.507059e+37
          %v328 = vand.u32 %v316, 2147483648
          %v329 = vor.u32 1.1754944e-38, %v328
          %v330 = vsel %vm327, %v329, %v325
          %v331 = vmul.f32 1.0, %v330
          %v332 = vld [vmem:[#allocation6] sm:$0x1]
          %v334 = vperm.slane %v332, 0
          %v336 = vmul.f32 %v334, %v298
          %v337 = vmul.f32 %v336, %v331
          %v338 = vld [vmem:[%s2] sm:$0x1]
          %v340 = vperm.slane %v338, 0
          %v342 = vadd.f32 %v337, %v340
          %v343 = vpack.c.bf16 %v342, %v342
          %vm344 = vcmask 257024
          %345 = vst.msk [vmem:[#allocation2] sm:$0xf] %vm344, %v343
        $region56: #{tpu_custom_call.1} parent=39 // pred_fallthru
          _
        %v346 = vld [vmem:[#allocation2] sm:$0xf]
        %v347 = vld [vmem:[#allocation8] sm:$0xf]
        %v348 = vld [vmem:[#allocation8 + $0x4] sm:$0xf]
        %v349 = vld [vmem:[#allocation8 + $0x8] sm:$0xf]
        %v350 = vld [vmem:[#allocation8 + $0xc] sm:$0xf]
        %v351 = vld [vmem:[%s4] sm:$0x1]
        %v353 = vperm.slane %v351, 0
        %v359 = vunpack.c.l.b16 %v347
        %v360 = vunpack.c.l.b16 %v348
        %v361 = vunpack.c.l.b16 %v349
        %v362 = vunpack.c.l.b16 %v350
        %v363 = vpack.c.b16 %v360, %v359
        %v364 = vpack.c.b16 %v362, %v361
        %vm367 = vcmask 261120
        %v369 = vsel %vm367, %v346, 0
        %371 = vmatpush.bf16.msra.mxu0 0
        %372 = vmatpush.bf16.msra.mxu0 0
        %373 = vmatpush.bf16.msra.mxu0 0
        %374 = vmatpush.bf16.msra.mxu0 0
        %375 = vmatpush.bf16.msra.mxu0 0
        %376 = vmatpush.bf16.msra.mxu0 0
        %377 = vmatpush.bf16.msra.mxu0 %v364
        %378 = vmatpush.bf16.msra.mxu0 %v363
        %379 = vmatmul.bf16.gmra.mxu0 %v369
        %v380 = vpop.f32.mrf.mxu0
        %v381 = vadd.f32 %v353, %v380
        %v382 = vpop.f32.mrf.mxu0
        %383 = vdwg.mxu0
        %v384 = vld [vmem:[%s249] sm:$0xff]
        %v385 = vadd.f32 %v384, %v381
        %386 = vst.msk [vmem:[%s286] sm:$0xff] %vm367, %v385
        %s387 = sand.u32 %s155, 1
        %s388 = scalar_lea.sflag [#allocation5], %s387
        %s389 = sand.u32 %s155, 1
        %s390 = smul.addr %s389, 8
        %s391 = scalar_lea.vmem [#allocation9], %s390
        // Predicated region
        $region57: #{tpu_custom_call.1} parent=39 // pred_check
          %p392 = pneg %p165
        $region58: #{tpu_custom_call.1} parent=39 // pred_check_branch
          %394 = sbr.rel (%p392) target = $region60
        $region59: #{tpu_custom_call.1} parent=39 // pred_region
          %396 = vsyncadd %s388, 0
          %s397 = sadd.s32 %s28, %s27
          %s398 = smul.addr %s397, 8
          %s399 = scalar_lea.hbm %s5, %s398
          %s401 = sshll.u32 %s391, 4
          %s402 = int_to_ptr.vmem [resolvable:$true] %s401
          %s403 = sshll.u32 %s399, 4
          %s404 = int_to_ptr.hbm [resolvable:$true] %s403
          %406 = dma.vmem_to_hbm [thread:$0]  %s402, 128, %s404, %s388
        $region60: #{tpu_custom_call.1} parent=39 // pred_fallthru
          _
      $region40: #{tpu_custom_call.1} parent=5 // pred_fallthru
        _
      %p407 = scmp.le.s32.totalorder 2, %s18
      // Predicated region
      $region61: #{tpu_custom_call.1} parent=5 // pred_check
        %p408 = pneg %p407
      $region62: #{tpu_custom_call.1} parent=5 // pred_check_branch
        %410 = sbr.rel (%p408) target = $region64
      $region63: #{tpu_custom_call.1} parent=5 // pred_region
        %s411 = ssub.s32 %s18, 2
        // Predicated region
        $region65: #{tpu_custom_call.1} parent=63 // pred_check
          %p412 = pneg %p171
        $region66: #{tpu_custom_call.1} parent=63 // pred_check_branch
          %414 = sbr.rel (%p412) target = $region68
        $region67: #{tpu_custom_call.1} parent=63 // pred_region
          %s415 = sand.u32 %s156, 1
          %s416 = scalar_lea.sflag [#allocation5], %s415
          %s417 = sand.u32 %s156, 1
          %s418 = smul.addr %s417, 8
          %s419 = scalar_lea.vmem [#allocation9], %s418
          %421 = dma.done %s416, 128
        $region68: #{tpu_custom_call.1} parent=63 // pred_fallthru
          _
      $region64: #{tpu_custom_call.1} parent=5 // pred_fallthru
        _
    $region6: #{tpu_custom_call.1} parent=1 // loop_footer
      %s22 = sadd.s32 1, %s18
    $region7: #{tpu_custom_call.1} parent=1 // loop_footer_branch
      %17 = sbr.rel target = $region3
    $region8: #{tpu_custom_call.1} parent=1 // loop_exit
      _
    %422 = vsyncpa [#allocation4], 1
    %s423 = scalar_lea.sflag [#allocation4], 1
    %424 = vsyncpa %s423, 1
    %425 = vsyncpa [#allocation7], 1
    %426 = vsyncpa [#allocation5], 1
    %s427 = scalar_lea.sflag [#allocation5], 1
    %428 = vsyncpa %s427, 1

</llo_original>
